<compile_context>
chip_gen: v5e
topology: v5e:2x2
jax: 0.10.0
libtpu: 0.0.40
codegen_flags: <defaults>
</compile_context>

<pallas_src>
import functools

import jax
import jax.numpy as jnp
from jax.experimental import pallas as pl
from jax.experimental.pallas import tpu as pltpu

_LANE = 128
_SUBLANE = 8


def _bce_partial_kernel(logits_ref, labels_ref, w_ref, out_ref, *, tile_b, batch):
    """One batch tile -> partial sum of w_b * log_softmax(logits)[b, y_b].

    logits_ref: [tile_b, C]    original dtype (partial edge block may hold garbage rows)
    labels_ref: [tile_b, 1]    int32
    w_ref:      [tile_b, 1]    f32  (class_weights[labels], gathered host-side)
    out_ref:    [1, 1, 128]    f32  (partial sum broadcast; lane-dense store)
    """
    logits = logits_ref[...].astype(jnp.float32)                     # [tb, C]
    tb, c = logits.shape

    # Row-validity mask: the partial last block reads garbage rows from HBM.
    # SELECT (not multiply) so garbage/NaN rows contribute exactly 0.
    row0 = pl.program_id(0) * tile_b
    row_ids = row0 + jax.lax.broadcasted_iota(jnp.int32, (tb, 1), 0)
    row_valid = row_ids < batch                                      # [tb, 1]

    # Numerically stable log-sum-exp over the class (lane) axis.
    m = jnp.max(logits, axis=-1, keepdims=True)                      # [tb, 1]
    sum_exp = jnp.sum(jnp.exp(logits - m), axis=-1, keepdims=True)   # [tb, 1]
    lse = m + jnp.log(sum_exp)                                       # [tb, 1]

    # Gather logits[b, label_b] from the raw logits via an iota == label mask;
    # log_probs are never materialized: log_prob[b, y_b] == g - lse.
    labels = labels_ref[...]                                         # [tb, 1]
    col = jax.lax.broadcasted_iota(jnp.int32, (tb, c), 1)
    g = jnp.sum(jnp.where(col == labels, logits, 0.0),
                axis=-1, keepdims=True)                              # [tb, 1]

    contrib = jnp.where(row_valid, w_ref[...] * (g - lse), 0.0)      # [tb, 1]
    psum = jnp.sum(contrib)
    out_ref[...] = jnp.full(out_ref.shape, psum, dtype=jnp.float32)


def _vmem_budget():
    """Generation-aware (target_tile_bytes, vmem_limit_bytes)."""
    vmem_cap = None
    try:
        vmem_cap = getattr(pltpu.get_tpu_info(), "vmem_capacity_bytes", None)
    except Exception:
        vmem_cap = None
    if vmem_cap is not None and vmem_cap >= 100 * 1024 * 1024:
        # v5e / v6e: 128 MiB physical VMEM -> big blocks, raised scoped limit.
        return 12 * 1024 * 1024, 100 * 1024 * 1024
    # v7x (64 MiB per TC) or unknown: keep 2x input block + a few tile-sized
    # f32 temps comfortably under the scoped limit.
    return 4 * 1024 * 1024, 48 * 1024 * 1024


def balanced_cross_entropy_loss(logits, labels, class_weights, *, tile_b=None):
    """logits: [B, C] float, labels: [B] int, class_weights: [C] float -> f32 scalar."""
    B, C = logits.shape
    itemsize = jnp.dtype(logits.dtype).itemsize

    target_tile_bytes, vmem_limit = _vmem_budget()

    # Size the batch tile by bytes, budgeted against the f32 in-kernel temps
    # (so bf16 inputs keep half the HBM traffic per step without shrinking temps).
    row_bytes = max(1, C * max(itemsize, 4))
    rows_fit = max(_SUBLANE,
                   (target_tile_bytes // row_bytes) // _SUBLANE * _SUBLANE)
    if tile_b is None:
        tile_b = rows_fit
    else:
        tile_b = min(int(tile_b), rows_fit)
    tile_b = max(_SUBLANE, (tile_b // _SUBLANE) * _SUBLANE)
    b_ceil = ((B + _SUBLANE - 1) // _SUBLANE) * _SUBLANE
    tile_b = min(tile_b, b_ceil)
    num_tiles = pl.cdiv(B, tile_b)

    # TODO(synk): for vocab-scale C add an inner "arbitrary" grid axis over class
    # chunks with an online-softmax recurrence (running max / sum-exp / gathered
    # logit in small VMEM scratch) so a row tile never needs the full class dim
    # resident in VMEM (the 64 MiB/TC budget on v7x hits this ceiling ~2x earlier).

    # Host-side work is only [B]-sized: per-row weights + column-shaped labels.
    labels_i32 = labels.astype(jnp.int32)
    labels_col = labels_i32.reshape(B, 1)
    w_col = class_weights.astype(jnp.float32)[labels_i32].reshape(B, 1)

    kernel = functools.partial(_bce_partial_kernel, tile_b=tile_b, batch=B)

    partials = pl.pallas_call(
        kernel,
        out_shape=jax.ShapeDtypeStruct((num_tiles, 1, _LANE), jnp.float32),
        grid=(num_tiles,),
        in_specs=[
            pl.BlockSpec((tile_b, C), lambda i: (i, 0)),   # full class dim per block
            pl.BlockSpec((tile_b, 1), lambda i: (i, 0)),
            pl.BlockSpec((tile_b, 1), lambda i: (i, 0)),
        ],
        out_specs=pl.BlockSpec((1, 1, _LANE), lambda i: (i, 0, 0)),
        compiler_params=pltpu.CompilerParams(
            dimension_semantics=("parallel",),
            vmem_limit_bytes=vmem_limit,
        ),
    )(logits, labels_col, w_col)

    # Tiny final reduction of per-tile partials; single multiply by 1/B.
    return -jnp.sum(partials[:, 0, 0]) / jnp.float32(B)


def _reference_loss(logits, labels, class_weights):
    log_probs = jax.nn.log_softmax(logits.astype(jnp.float32), axis=-1)
    gather = jnp.take_along_axis(
        log_probs, labels.astype(jnp.int32)[:, None], axis=-1)[:, 0]
    w = class_weights.astype(jnp.float32)[labels]
    return -jnp.sum(w * gather) / labels.shape[0]


if __name__ == "__main__":
    key = jax.random.PRNGKey(0)
    k1, k2, k3, k4 = jax.random.split(key, 4)

    # Test 1: module-like small shapes (C=3, B not a multiple of 8 -> single
    # partial block, unpadded class dim).
    B1, C1 = 10, 3
    logits1 = jax.random.normal(k1, (B1, C1), dtype=jnp.float32)
    labels1 = jax.random.randint(k2, (B1,), 0, C1, dtype=jnp.int32)
    cw1 = jnp.array([0.5, 1.0, 2.0], dtype=jnp.float32)
    out1 = jax.block_until_ready(balanced_cross_entropy_loss(logits1, labels1, cw1))
    ref1 = _reference_loss(logits1, labels1, cw1)
    assert jnp.allclose(out1, ref1, rtol=1e-5, atol=1e-5), (out1, ref1)

    # Test 2: multi-tile grid with a ragged last tile (exercises the in-kernel
    # row-validity mask across several grid steps).
    B2, C2 = 300, 7
    logits2 = jax.random.normal(k3, (B2, C2), dtype=jnp.float32)
    labels2 = jax.random.randint(k4, (B2,), 0, C2, dtype=jnp.int32)
    cw2 = jnp.linspace(0.5, 1.5, C2, dtype=jnp.float32)
    out2 = jax.block_until_ready(
        balanced_cross_entropy_loss(logits2, labels2, cw2, tile_b=64))
    ref2 = _reference_loss(logits2, labels2, cw2)
    assert jnp.allclose(out2, ref2, rtol=1e-5, atol=1e-5), (out2, ref2)

    print("KERNEL_OK")
</pallas_src>

<mosaic_0001>
module attributes {stable_mosaic.version = 11 : i64} {
  func.func @_bce_partial_kernel(%arg0: i32, %arg1: memref<16x3xf32, #tpu.memory_space<vmem>>, %arg2: memref<16x1xi32, #tpu.memory_space<vmem>>, %arg3: memref<16x1xf32, #tpu.memory_space<vmem>>, %arg4: memref<1x1x128xf32, #tpu.memory_space<vmem>>) attributes {dimension_semantics = [#tpu.dimension_semantics<parallel>], iteration_bounds = array<i64: 1>, scalar_prefetch = 0 : i64, scratch_operands = 0 : i64, tpu.core_type = #tpu.core_type<tc>, window_params = [{transform_indices = @transform_0, window_bounds = array<i64: 16, 3>}, {transform_indices = @transform_1, window_bounds = array<i64: 16, 1>}, {transform_indices = @transform_2, window_bounds = array<i64: 16, 1>}, {transform_indices = @transform_3, window_bounds = array<i64: 1, 1, 128>}]} {
    %c0 = arith.constant 0 : index
    %c0_0 = arith.constant 0 : index
    %0 = vector.load %arg1[%c0, %c0_0] : memref<16x3xf32, #tpu.memory_space<vmem>>, vector<16x3xf32>
    %c16_i32 = arith.constant 16 : i32
    %1 = arith.muli %arg0, %c16_i32 : i32
    %2 = tpu.iota {dimensions = array<i32: 0>} : vector<16x1xi32>
    %3 = vector.broadcast %1 : i32 to vector<16x1xi32>
    %4 = arith.addi %3, %2 : vector<16x1xi32>
    %c10_i32 = arith.constant 10 : i32
    %5 = vector.broadcast %c10_i32 : i32 to vector<16x1xi32>
    %6 = arith.cmpi slt, %4, %5 : vector<16x1xi32>
    %cst = arith.constant dense<0xFF800000> : vector<16xf32>
    %7 = vector.multi_reduction <maximumf>, %0, %cst [1] : vector<16x3xf32> to vector<16xf32>
    %8 = vector.shape_cast %7 : vector<16xf32> to vector<16x1xf32>
    %9 = vector.broadcast %8 : vector<16x1xf32> to vector<16x3xf32>
    %10 = arith.subf %0, %9 : vector<16x3xf32>
    %11 = math.exp %10 : vector<16x3xf32>
    %cst_1 = arith.constant dense<0.000000e+00> : vector<16xf32>
    %12 = vector.multi_reduction <add>, %11, %cst_1 [1] : vector<16x3xf32> to vector<16xf32>
    %13 = vector.shape_cast %12 : vector<16xf32> to vector<16x1xf32>
    %14 = math.log %13 : vector<16x1xf32>
    %15 = arith.addf %8, %14 : vector<16x1xf32>
    %c0_2 = arith.constant 0 : index
    %c0_3 = arith.constant 0 : index
    %16 = vector.load %arg2[%c0_2, %c0_3] : memref<16x1xi32, #tpu.memory_space<vmem>>, vector<16x1xi32>
    %17 = tpu.iota {dimensions = array<i32: 1>} : vector<16x3xi32>
    %18 = vector.broadcast %16 : vector<16x1xi32> to vector<16x3xi32>
    %19 = arith.cmpi eq, %17, %18 : vector<16x3xi32>
    %cst_4 = arith.constant 0.000000e+00 : f32
    %20 = vector.broadcast %cst_4 : f32 to vector<16x3xf32>
    %21 = arith.select %19, %0, %20 : vector<16x3xi1>, vector<16x3xf32>
    %cst_5 = arith.constant dense<0.000000e+00> : vector<16xf32>
    %22 = vector.multi_reduction <add>, %21, %cst_5 [1] : vector<16x3xf32> to vector<16xf32>
    %23 = vector.shape_cast %22 : vector<16xf32> to vector<16x1xf32>
    %c0_6 = arith.constant 0 : index
    %c0_7 = arith.constant 0 : index
    %24 = vector.load %arg3[%c0_6, %c0_7] : memref<16x1xf32, #tpu.memory_space<vmem>>, vector<16x1xf32>
    %25 = arith.subf %23, %15 : vector<16x1xf32>
    %26 = arith.mulf %24, %25 : vector<16x1xf32>
    %cst_8 = arith.constant 0.000000e+00 : f32
    %27 = vector.broadcast %cst_8 : f32 to vector<16x1xf32>
    %28 = arith.select %6, %26, %27 : vector<16x1xi1>, vector<16x1xf32>
    %29 = vector.shape_cast %28 : vector<16x1xf32> to vector<1x16x1xf32>
    %cst_9 = arith.constant dense<0.000000e+00> : vector<1xf32>
    %30 = vector.multi_reduction <add>, %29, %cst_9 [1, 2] : vector<1x16x1xf32> to vector<1xf32>
    %31 = vector.shape_cast %30 : vector<1xf32> to vector<1x1x1xf32>
    %32 = vector.extract %31[0, 0, 0] : f32 from vector<1x1x1xf32>
    %33 = vector.broadcast %32 : f32 to vector<1x1x128xf32>
    %c0_10 = arith.constant 0 : index
    %c0_11 = arith.constant 0 : index
    %c0_12 = arith.constant 0 : index
    %34 = vector.load %arg4[%c0_10, %c0_11, %c0_12] : memref<1x1x128xf32, #tpu.memory_space<vmem>>, vector<1x1x128xf32>
    tpu.vector_store %arg4[%c0_10, %c0_11, %c0_12], %33 {strides = array<i32>} : memref<1x1x128xf32, #tpu.memory_space<vmem>>, vector<1x1x128xf32>,
    return
  }
  func.func @transform_0(%arg0: i32) -> (i32, i32) {
    %c0_i32 = arith.constant 0 : i32
    %c0_i32_0 = arith.constant 0 : i32
    return %arg0, %c0_i32 : i32, i32
  }
  func.func @transform_1(%arg0: i32) -> (i32, i32) {
    %c0_i32 = arith.constant 0 : i32
    %c0_i32_0 = arith.constant 0 : i32
    return %arg0, %c0_i32 : i32, i32
  }
  func.func @transform_2(%arg0: i32) -> (i32, i32) {
    %c0_i32 = arith.constant 0 : i32
    %c0_i32_0 = arith.constant 0 : i32
    return %arg0, %c0_i32 : i32, i32
  }
  func.func @transform_3(%arg0: i32) -> (i32, i32, i32) {
    %c0_i32 = arith.constant 0 : i32
    %c0_i32_0 = arith.constant 0 : i32
    %c0_i32_1 = arith.constant 0 : i32
    return %arg0, %c0_i32, %c0_i32_0 : i32, i32, i32
  }
}

</mosaic_0001>

<llo_original>
// kernel: tpu_custom_call.1
$region0: #{tpu_custom_call.1}
  #allocation0 [shape = 'u32[]', space=smem, size = 0x4, offset = 0x4, fixed_abs, tag = 'smem constant byte address 0x4 - core index']
  #allocation1 [shape = 'u32[72,128]{1,0:T(1,128)}', space=vmem, size = 0x9000, scoped, tag = 'internal scratch']
  %s0 = inlined_call_operand.vmem [shape: f32[10,3], index: 0, kind: input, shape index: {}]
  %s1 = inlined_call_operand.vmem [shape: s32[10,1], index: 1, kind: input, shape index: {}]
  %s2 = inlined_call_operand.vmem [shape: f32[10,1], index: 2, kind: input, shape index: {}]
  %s3 = inlined_call_operand.hbm [shape: f32[1,1,128], index: 3, kind: output, shape index: {}]
  %s4 = sld [smem:[#allocation0]]
  $region22: #{tpu_custom_call.1} parent=0
    _
  %s6 = ssub.s32 1, %s4
  %s7 = scalar_select 0, %s6, %s4
  $region1: #{tpu_custom_call.1} parent=0
    #allocation2 [shape = 'u8[512]{0}', space=vmem, size = 0x400, scoped, tag = 'output window, operand 0, single buffered']
    #allocation3 [shape = 's32[1]{0}', space=sflag, size = 0x4, scoped, tag = 'scoped memory for tpu_custom_call.1']
    %8 = vsyncpa [#allocation3], 0
    // Predicated region
    $region2: #{tpu_custom_call.1} parent=1 // pred_check
      _
    $region3: #{tpu_custom_call.1} parent=1 // pred_check_branch
      %10 = sbr.rel (0) target = $region5
    $region4: #{tpu_custom_call.1} parent=1 // pred_region
      _
    $region5: #{tpu_custom_call.1} parent=1 // pred_fallthru
      _
    // Predicated region
    $region6: #{tpu_custom_call.1} parent=1 // pred_check
      _
    $region7: #{tpu_custom_call.1} parent=1 // pred_check_branch
      %12 = sbr.rel (0) target = $region9
    $region8: #{tpu_custom_call.1} parent=1 // pred_region
      _
    $region9: #{tpu_custom_call.1} parent=1 // pred_fallthru
      _
    // Predicated region
    $region10: #{tpu_custom_call.1} parent=1 // pred_check
      _
    $region11: #{tpu_custom_call.1} parent=1 // pred_check_branch
      %14 = sbr.rel (0) target = $region13
    $region12: #{tpu_custom_call.1} parent=1 // pred_region
      _
    $region13: #{tpu_custom_call.1} parent=1 // pred_fallthru
      _
    %v15 = vld [vmem:[%s0] sm:$0xff]
    %v16 = vld [vmem:[%s0 + $0x8] sm:$0xff]
    %s17 = smul.u32 0, 16
    %v18 = vlaneseq
    %v19 = vshrl.u32 %v18, 7
    %v20 = vadd.s32 %v19, 8
    %v21 = vstv %s17
    %v22 = vadd.s32 %v21, %v19
    %v23 = vadd.s32 %v21, %v20
    %vm24 = vcmp.lt.s32.totalorder %v22, 10
    %vm25 = vcmp.lt.s32.totalorder %v23, 10
    %vm26 = vcmask 23552
    %v27 = vsel %vm26, %v15, -inf
    %28 = vmax.xlane.f32.xlu0 %v27
    %v29 = vpop.xlane.xlu0 %28
    %v30 = vsel %vm26, %v16, -inf
    %31 = vmax.xlane.f32.xlu0 %v30
    %v32 = vpop.xlane.xlu0 %31
    %v33 = vsub.f32 %v15, %v29
    %v34 = vsub.f32 %v16, %v32
    %v35 = vmul.f32 %v33, 1.442695
    %v36 = vpow.pop %v35
    %v37 = vmul.f32 %v34, 1.442695
    %v38 = vpow.pop %v37
    %v39 = vsel %vm26, %v36, 0.0
    %40 = vadd.xlane.f32.xlu0 %v39
    %v41 = vpop.xlane.xlu0 %40
    %v42 = vsel %vm26, %v38, 0.0
    %43 = vadd.xlane.f32.xlu0 %v42
    %v44 = vpop.xlane.xlu0 %43
    %v45 = vlog2.pop %v41
    %v46 = vmul.f32 %v45, 0.6931472
    %v47 = vlog2.pop %v44
    %v48 = vmul.f32 %v47, 0.6931472
    %v49 = vadd.f32 %v29, %v46
    %v50 = vadd.f32 %v32, %v48
    %v51 = vld [vmem:[%s1] sm:$0xff]
    %v52 = vld [vmem:[%s1 + $0x8] sm:$0xff]
    %v53 = vlaneseq
    %v54 = vand.u32 %v53, 127
    %55 = vset.pattern.permute.xlu0 0
    %56 = vperm.xlu0 %55, %v51
    %v57 = vpop.permute.xlu0 %56
    %58 = vset.pattern.permute.xlu0 0
    %59 = vperm.xlu0 %58, %v52
    %v60 = vpop.permute.xlu0 %59
    %vm61 = vcmp.eq.s32.totalorder %v54, %v57
    %vm62 = vcmp.eq.s32.totalorder %v54, %v60
    %v63 = vsel %vm61, %v15, 0.0
    %v64 = vsel %vm62, %v16, 0.0
    %v65 = vsel %vm26, %v63, 0.0
    %66 = vadd.xlane.f32.xlu0 %v65
    %v67 = vpop.xlane.xlu0 %66
    %v68 = vsel %vm26, %v64, 0.0
    %69 = vadd.xlane.f32.xlu0 %v68
    %v70 = vpop.xlane.xlu0 %69
    %v71 = vld [vmem:[%s2] sm:$0xff]
    %v72 = vld [vmem:[%s2 + $0x8] sm:$0xff]
    %v73 = vsub.f32 %v67, %v49
    %v74 = vsub.f32 %v70, %v50
    %v75 = vmul.f32 %v71, %v73
    %v76 = vmul.f32 %v72, %v74
    %v77 = vsel %vm24, %v75, 0.0
    %v78 = vsel %vm25, %v76, 0.0
    %vm79 = vcmask 7168
    %v80 = vsel %vm79, %v77, 0.0
    %v81 = vsel %vm79, %v78, 0.0
    %v82 = vadd.f32 %v80, %v81
    %83 = vadd.xlane.f32.xlu0 %v82
    %v84 = vpop.xlane.xlu0 %83
    %v85 = vrot.slane %v84, 4
    %v86 = vadd.f32 %v84, %v85
    %v87 = vrot.slane %v86, 2
    %v88 = vadd.f32 %v86, %v87
    %v89 = vrot.slane %v88, 1
    %v90 = vadd.f32 %v88, %v89
    %s91 = vtos %v90
    %v92 = vstv %s91
    %93 = vst [vmem:[#allocation2] sm:$0x1] %v92
    // Predicated region
    $region14: #{tpu_custom_call.1} parent=1 // pred_check
      _
    $region15: #{tpu_custom_call.1} parent=1 // pred_check_branch
      %95 = sbr.rel (0) target = $region17
    $region16: #{tpu_custom_call.1} parent=1 // pred_region
      %97 = vsyncadd [#allocation3], 0
      %s99 = sshll.u32 [#allocation2], 4
      %s100 = int_to_ptr.vmem [resolvable:$true] %s99
      %s101 = sshll.u32 %s3, 4
      %s102 = int_to_ptr.hbm [resolvable:$true] %s101
      %104 = dma.vmem_to_hbm [thread:$0]  %s100, 16, %s102, [#allocation3]
    $region17: #{tpu_custom_call.1} parent=1 // pred_fallthru
      _
    // Predicated region
    $region18: #{tpu_custom_call.1} parent=1 // pred_check
      _
    $region19: #{tpu_custom_call.1} parent=1 // pred_check_branch
      %106 = sbr.rel (0) target = $region21
    $region20: #{tpu_custom_call.1} parent=1 // pred_region
      %108 = dma.done [#allocation3], 16
    $region21: #{tpu_custom_call.1} parent=1 // pred_fallthru
      _
    %109 = vsyncpa [#allocation3], 1

</llo_original>
